<compile_context>
chip_gen: v5e
topology: v5e:2x2
jax: 0.10.0
libtpu: 0.0.40
codegen_flags: <defaults>
</compile_context>

<pallas_src>
import jax
import jax.numpy as jnp
from jax import lax
from jax.experimental import pallas as pl
from jax.experimental.pallas import tpu as pltpu


def _round_up(x: int, m: int) -> int:
    return (x + m - 1) // m * m


def _vmem_capacity_bytes() -> int:
    try:
        return int(pltpu.get_tpu_info().vmem_capacity_bytes)
    except Exception:
        return 64 * 1024 * 1024  # conservative (v7x per-core VMEM)


def _tile_need_bytes(Hp: int, tk: int, tb: int, itemsize: int) -> int:
    # Conservative tally (assumes double-buffering everywhere).
    return (2 * Hp * tk * itemsize      # W1^T tile
            + 2 * tb * tk * itemsize    # x tile
            + Hp * tb * 4               # f32 accumulator scratch
            + 2 * tb * 4                # (1, tb) output row
            + 4 * Hp * 4)               # b1 + w2 columns


def mlp_kernel(x_ref, w1T_ref, b1_ref, w2_ref, b2_ref, o_ref, acc_ref):
    # x_ref  : (tb, tk)   activation tile (batch rows, K on lanes)
    # w1T_ref: (Hp, tk)   first-layer weight (transposed), K on lanes
    # b1_ref : (Hp, 1)    first-layer bias column (f32)
    # w2_ref : (Hp, 1)    second-layer weight column (f32)
    # b2_ref : (1,)       second-layer bias scalar in SMEM
    # o_ref  : (1, tb)    lane-dense output row (one scalar per batch lane)
    # acc_ref: (Hp, tb)   f32 accumulator, resident across the K axis
    k = pl.program_id(1)

    @pl.when(k == 0)
    def _():
        # Fold the b1 add into the accumulator init (one fewer VPU pass).
        acc_ref[...] = jnp.broadcast_to(b1_ref[...], acc_ref.shape)

    # Transposed contraction: (Hp, tk) x (tb, tk) -> (Hp, tb), f32 MXU accumulation.
    acc_ref[...] += lax.dot_general(
        w1T_ref[...], x_ref[...],
        dimension_numbers=(((1,), (1,)), ((), ())),
        preferred_element_type=jnp.float32)

    @pl.when(k == pl.num_programs(1) - 1)
    def _():
        h = jnp.maximum(acc_ref[...], 0.0)                        # ReLU on VPU
        # Second layer (H -> 1): VPU multiply + sublane reduction (no Nx1 MXU pass);
        # result already lane-dense along the batch axis.
        y = jnp.sum(h * w2_ref[...], axis=0, keepdims=True)       # (1, tb)
        o_ref[...] = (y + b2_ref[0]).astype(o_ref.dtype)


def prepare_predictor_params(w1, b1, w2, b2, *, compute_dtype=jnp.bfloat16):
    """One-time parameter preparation (do this at model-load time, not per call)."""
    D, H = w1.shape
    Dp = _round_up(D, 128)
    Hp = _round_up(H, 128)
    cdt = jnp.dtype(compute_dtype)

    w1T = jnp.pad(w1, ((0, Dp - D), (0, Hp - H))).T               # (Hp, Dp)
    if w1T.dtype != cdt:
        w1T = w1T.astype(cdt)
    b1c = jnp.pad(jnp.ravel(b1).astype(jnp.float32), (0, Hp - H)).reshape(Hp, 1)
    w2c = jnp.pad(jnp.ravel(w2).astype(jnp.float32), (0, Hp - H)).reshape(Hp, 1)
    b2s = jnp.ravel(jnp.asarray(b2, dtype=jnp.float32))[:1]        # (1,) SMEM scalar

    return dict(w1T=w1T, b1=b1c, w2=w2c, b2=b2s,
                D=D, H=H, Dp=Dp, Hp=Hp, compute_dtype=cdt)


def _pallas_forward(xp, params, tb, B_pad, tk, vmem_limit, single_buffer_weights):
    Hp, Dp = params["Hp"], params["Dp"]
    grid_b = B_pad // tb
    grid_k = Dp // tk
    itemsize = params["compute_dtype"].itemsize

    def w1_spec():
        if single_buffer_weights and grid_k == 1:
            return pl.BlockSpec((Hp, tk), lambda i, k: (0, k),
                                pipeline_mode=pl.Buffered(1))
        return pl.BlockSpec((Hp, tk), lambda i, k: (0, k))

    def const_spec(shape):
        if single_buffer_weights:
            return pl.BlockSpec(shape, lambda i, k: (0, 0),
                                pipeline_mode=pl.Buffered(1))
        return pl.BlockSpec(shape, lambda i, k: (0, 0))

    cost = pl.CostEstimate(
        flops=2 * B_pad * Dp * Hp + 2 * B_pad * Hp,
        transcendentals=0,
        bytes_accessed=(B_pad * Dp * itemsize
                        + grid_b * Hp * Dp * itemsize
                        + (2 * Hp + 1) * 4 + B_pad * 4),
    )

    return pl.pallas_call(
        mlp_kernel,
        out_shape=jax.ShapeDtypeStruct((1, B_pad), jnp.float32),
        grid_spec=pltpu.PrefetchScalarGridSpec(
            num_scalar_prefetch=0,
            grid=(grid_b, grid_k),
            in_specs=[
                pl.BlockSpec((tb, tk), lambda i, k: (i, k)),          # x tile
                w1_spec(),                                             # W1^T tile
                const_spec((Hp, 1)),                                   # b1 column
                const_spec((Hp, 1)),                                   # w2 column
                pl.BlockSpec(memory_space=pltpu.MemorySpace.SMEM),     # b2 scalar
            ],
            out_specs=pl.BlockSpec((1, tb), lambda i, k: (0, i)),      # lane-dense row
            scratch_shapes=[pltpu.VMEM((Hp, tb), jnp.float32)],        # accumulator
        ),
        compiler_params=pltpu.CompilerParams(
            dimension_semantics=("parallel", "arbitrary"),
            vmem_limit_bytes=vmem_limit,
        ),
        cost_estimate=cost,
    )(xp, params["w1T"], params["b1"], params["w2"], params["b2"])


def predictor_forward_prepared(x, params, *, tb_max=1024):
    """y = relu(x @ W1 + b1) @ w2 + b2 with pre-prepared params.  x: [B, D] -> [B, 1]."""
    B, D = x.shape
    assert D == params["D"], f"expected D={params['D']}, got {D}"
    Dp, Hp = params["Dp"], params["Hp"]
    cdt = params["compute_dtype"]
    itemsize = cdt.itemsize

    capacity = _vmem_capacity_bytes()
    budget = int(capacity * 0.7)

    # Batch tile: as large as possible (amortizes per-grid-step overhead), shrunk
    # only if the f32 accumulator + minimal tiles would blow the VMEM budget.
    tb = min(_round_up(B, 128), _round_up(tb_max, 128))
    while tb > 128 and _tile_need_bytes(Hp, 128, tb, itemsize) > budget:
        tb -= 128
    B_pad = _round_up(B, tb)

    # K tile: largest 128-multiple divisor of Dp whose buffer tally fits the budget.
    tk = 128
    for cand in (Dp, 2048, 1024, 512, 256, 128):
        if cand <= Dp and Dp % cand == 0 and _tile_need_bytes(Hp, cand, tb, itemsize) <= budget:
            tk = cand
            break

    need = _tile_need_bytes(Hp, tk, tb, itemsize)
    vmem_limit = max(32 * 1024 * 1024, min(int(capacity * 0.9), need + 8 * 1024 * 1024))

    # Per-call activation prep only: cast/pad x only when actually needed.
    xp = x
    if xp.dtype != cdt:
        xp = xp.astype(cdt)
    if (B_pad, Dp) != (B, D):
        xp = jnp.pad(xp, ((0, B_pad - B), (0, Dp - D)))

    try:
        out = _pallas_forward(xp, params, tb, B_pad, tk, vmem_limit,
                              single_buffer_weights=True)
    except Exception:
        # Fallback if single-buffered (Buffered(1)) resident specs are unsupported.
        out = _pallas_forward(xp, params, tb, B_pad, tk, vmem_limit,
                              single_buffer_weights=False)

    return out.reshape(B_pad)[:B].reshape(B, 1)


def predictor_forward(x, w1, b1, w2, b2, *, compute_dtype=jnp.bfloat16, tb_max=1024):
    """Convenience wrapper: prepares params and runs the forward pass once."""
    params = prepare_predictor_params(w1, b1, w2, b2, compute_dtype=compute_dtype)
    return predictor_forward_prepared(x, params, tb_max=tb_max)


if __name__ == "__main__":
    # Deterministic synthetic parameters and inputs (small shapes).
    B, D, H = 16, 32, 32
    key = jax.random.PRNGKey(0)
    kx, kw1, kb1, kw2, kb2 = jax.random.split(key, 5)

    x = jax.random.normal(kx, (B, D), dtype=jnp.float32)
    w1 = jax.random.normal(kw1, (D, H), dtype=jnp.float32) * 0.1
    b1 = jax.random.normal(kb1, (1, H), dtype=jnp.float32) * 0.1
    w2 = jax.random.normal(kw2, (H, 1), dtype=jnp.float32) * 0.1
    b2 = jax.random.normal(kb2, (1, 1), dtype=jnp.float32) * 0.1

    # Pure-JAX reference (same semantics as torch Linear/ReLU/Linear).
    ref = jnp.maximum(x @ w1 + b1, 0.0) @ w2 + b2

    # f32 path with one-time (hoisted) parameter prep, tight tolerance.
    params_f32 = prepare_predictor_params(w1, b1, w2, b2, compute_dtype=jnp.float32)
    out = jax.block_until_ready(predictor_forward_prepared(x, params_f32))
    assert out.shape == (B, 1)
    assert jnp.allclose(out, ref, atol=1e-5, rtol=1e-5)

    # Default bf16 compute path (f32 MXU accumulation), looser tolerance.
    out_bf16 = jax.block_until_ready(predictor_forward(x, w1, b1, w2, b2))
    assert out_bf16.shape == (B, 1)
    assert jnp.allclose(out_bf16, ref, atol=5e-2, rtol=5e-2)

    print("KERNEL_OK")
</pallas_src>

<mosaic_0001>
module attributes {stable_mosaic.version = 11 : i64} {
  func.func @mlp_kernel(%arg0: i32, %arg1: i32, %arg2: memref<128x128xf32, #tpu.memory_space<vmem>>, %arg3: memref<128x128xf32, #tpu.memory_space<vmem>>, %arg4: memref<128x1xf32, #tpu.memory_space<vmem>>, %arg5: memref<128x1xf32, #tpu.memory_space<vmem>>, %arg6: memref<1xf32, #tpu.memory_space<smem>>, %arg7: memref<1x128xf32, #tpu.memory_space<vmem>>, %arg8: memref<128x128xf32, #tpu.memory_space<vmem>>) attributes {dimension_semantics = [#tpu.dimension_semantics<parallel>, #tpu.dimension_semantics<arbitrary>], iteration_bounds = array<i64: 1, 1>, scalar_prefetch = 0 : i64, scratch_operands = 1 : i64, tpu.core_type = #tpu.core_type<tc>, window_params = [{transform_indices = @transform_0, window_bounds = array<i64: 128, 128>}, {pipeline_mode = #tpu.pipeline_mode<synchronous>, transform_indices = @transform_1, window_bounds = array<i64: 128, 128>}, {pipeline_mode = #tpu.pipeline_mode<synchronous>, transform_indices = @transform_2, window_bounds = array<i64: 128, 1>}, {pipeline_mode = #tpu.pipeline_mode<synchronous>, transform_indices = @transform_3, window_bounds = array<i64: 128, 1>}, {transform_indices = @transform_4, window_bounds = array<i64: 1>}, {transform_indices = @transform_5, window_bounds = array<i64: 1, 128>}]} {
    %c0_i32 = arith.constant 0 : i32
    %0 = arith.cmpi eq, %arg1, %c0_i32 : i32
    %1 = arith.extui %0 : i1 to i32
    %c0_i32_0 = arith.constant 0 : i32
    %2 = arith.cmpi ne, %1, %c0_i32_0 : i32
    scf.if %2 {
      %c0_10 = arith.constant 0 : index
      %c0_11 = arith.constant 0 : index
      %12 = vector.load %arg4[%c0_10, %c0_11] : memref<128x1xf32, #tpu.memory_space<vmem>>, vector<128x1xf32>
      %13 = vector.shape_cast %12 : vector<128x1xf32> to vector<128x1xf32>
      %14 = vector.broadcast %13 : vector<128x1xf32> to vector<128x128xf32>
      %c0_12 = arith.constant 0 : index
      %c0_13 = arith.constant 0 : index
      %15 = vector.load %arg8[%c0_12, %c0_13] : memref<128x128xf32, #tpu.memory_space<vmem>>, vector<128x128xf32>
      tpu.vector_store %arg8[%c0_12, %c0_13], %14 {strides = array<i32>} : memref<128x128xf32, #tpu.memory_space<vmem>>, vector<128x128xf32>,
    } else {
    }
    %c0 = arith.constant 0 : index
    %c0_1 = arith.constant 0 : index
    %3 = vector.load %arg8[%c0, %c0_1] : memref<128x128xf32, #tpu.memory_space<vmem>>, vector<128x128xf32>
    %c0_2 = arith.constant 0 : index
    %c0_3 = arith.constant 0 : index
    %4 = vector.load %arg3[%c0_2, %c0_3] : memref<128x128xf32, #tpu.memory_space<vmem>>, vector<128x128xf32>
    %c0_4 = arith.constant 0 : index
    %c0_5 = arith.constant 0 : index
    %5 = vector.load %arg2[%c0_4, %c0_5] : memref<128x128xf32, #tpu.memory_space<vmem>>, vector<128x128xf32>
    %cst = arith.constant dense<0.000000e+00> : vector<128x128xf32>
    %6 = tpu.matmul %4, %5, %cst {dimension_numbers = #tpu.dot_dimension_numbers<[1], [1], [0], [0], [0, 0, 1, 0], [], []>} : vector<128x128xf32>, vector<128x128xf32>, vector<128x128xf32> -> vector<128x128xf32>
    %7 = arith.addf %3, %6 : vector<128x128xf32>
    %c0_6 = arith.constant 0 : index
    %c0_7 = arith.constant 0 : index
    %8 = vector.load %arg8[%c0_6, %c0_7] : memref<128x128xf32, #tpu.memory_space<vmem>>, vector<128x128xf32>
    tpu.vector_store %arg8[%c0_6, %c0_7], %7 {strides = array<i32>} : memref<128x128xf32, #tpu.memory_space<vmem>>, vector<128x128xf32>,
    %c0_i32_8 = arith.constant 0 : i32
    %9 = arith.cmpi eq, %arg1, %c0_i32_8 : i32
    %10 = arith.extui %9 : i1 to i32
    %c0_i32_9 = arith.constant 0 : i32
    %11 = arith.cmpi ne, %10, %c0_i32_9 : i32
    scf.if %11 {
      %c0_10 = arith.constant 0 : index
      %c0_11 = arith.constant 0 : index
      %12 = vector.load %arg8[%c0_10, %c0_11] : memref<128x128xf32, #tpu.memory_space<vmem>>, vector<128x128xf32>
      %cst_12 = arith.constant 0.000000e+00 : f32
      %13 = vector.broadcast %cst_12 : f32 to vector<128x128xf32>
      %14 = arith.maximumf %12, %13 : vector<128x128xf32>
      %c0_13 = arith.constant 0 : index
      %c0_14 = arith.constant 0 : index
      %15 = vector.load %arg5[%c0_13, %c0_14] : memref<128x1xf32, #tpu.memory_space<vmem>>, vector<128x1xf32>
      %16 = vector.broadcast %15 : vector<128x1xf32> to vector<128x128xf32>
      %17 = arith.mulf %14, %16 : vector<128x128xf32>
      %cst_15 = arith.constant dense<0.000000e+00> : vector<128xf32>
      %18 = vector.multi_reduction <add>, %17, %cst_15 [0] : vector<128x128xf32> to vector<128xf32>
      %19 = vector.shape_cast %18 : vector<128xf32> to vector<1x128xf32>
      %c0_16 = arith.constant 0 : index
      %20 = memref.load %arg6[%c0_16] : memref<1xf32, #tpu.memory_space<smem>>
      %21 = vector.broadcast %20 : f32 to vector<1x128xf32>
      %22 = arith.addf %19, %21 : vector<1x128xf32>
      %c0_17 = arith.constant 0 : index
      %c0_18 = arith.constant 0 : index
      %23 = vector.load %arg7[%c0_17, %c0_18] : memref<1x128xf32, #tpu.memory_space<vmem>>, vector<1x128xf32>
      tpu.vector_store %arg7[%c0_17, %c0_18], %22 {strides = array<i32>} : memref<1x128xf32, #tpu.memory_space<vmem>>, vector<1x128xf32>,
    } else {
    }
    return
  }
  func.func @transform_0(%arg0: i32, %arg1: i32) -> (i32, i32) {
    %c0_i32 = arith.constant 0 : i32
    return %arg0, %arg1 : i32, i32
  }
  func.func @transform_1(%arg0: i32, %arg1: i32) -> (i32, i32) {
    %c0_i32 = arith.constant 0 : i32
    %c0_i32_0 = arith.constant 0 : i32
    return %c0_i32, %arg1 : i32, i32
  }
  func.func @transform_2(%arg0: i32, %arg1: i32) -> (i32, i32) {
    %c0_i32 = arith.constant 0 : i32
    %c0_i32_0 = arith.constant 0 : i32
    %c0_i32_1 = arith.constant 0 : i32
    return %c0_i32, %c0_i32_0 : i32, i32
  }
  func.func @transform_3(%arg0: i32, %arg1: i32) -> (i32, i32) {
    %c0_i32 = arith.constant 0 : i32
    %c0_i32_0 = arith.constant 0 : i32
    %c0_i32_1 = arith.constant 0 : i32
    return %c0_i32, %c0_i32_0 : i32, i32
  }
  func.func @transform_4(%arg0: i32, %arg1: i32) -> i32 {
    %c0_i32 = arith.constant 0 : i32
    %c0_i32_0 = arith.constant 0 : i32
    return %c0_i32 : i32
  }
  func.func @transform_5(%arg0: i32, %arg1: i32) -> (i32, i32) {
    %c0_i32 = arith.constant 0 : i32
    %c0_i32_0 = arith.constant 0 : i32
    return %c0_i32, %arg0 : i32, i32
  }
}

module attributes {stable_mosaic.version = 11 : i64} {
  func.func @mlp_kernel(%arg0: i32, %arg1: i32, %arg2: memref<128x128xf32, #tpu.memory_space<vmem>>, %arg3: memref<128x128xf32, #tpu.memory_space<vmem>>, %arg4: memref<128x1xf32, #tpu.memory_space<vmem>>, %arg5: memref<128x1xf32, #tpu.memory_space<vmem>>, %arg6: memref<1xf32, #tpu.memory_space<smem>>, %arg7: memref<1x128xf32, #tpu.memory_space<vmem>>, %arg8: memref<128x128xf32, #tpu.memory_space<vmem>>) attributes {dimension_semantics = [#tpu.dimension_semantics<parallel>, #tpu.dimension_semantics<arbitrary>], iteration_bounds = array<i64: 1, 1>, scalar_prefetch = 0 : i64, scratch_operands = 1 : i64, tpu.core_type = #tpu.core_type<tc>, window_params = [{transform_indices = @transform_0, window_bounds = array<i64: 128, 128>}, {transform_indices = @transform_1, window_bounds = array<i64: 128, 128>}, {pipeline_mode = #tpu.pipeline_mode<synchronous>, transform_indices = @transform_2, window_bounds = array<i64: 128, 1>}, {pipeline_mode = #tpu.pipeline_mode<synchronous>, transform_indices = @transform_3, window_bounds = array<i64: 128, 1>}, {transform_indices = @transform_4, window_bounds = array<i64: 1>}, {transform_indices = @transform_5, window_bounds = array<i64: 1, 128>}]} {
    %c0_i32 = arith.constant 0 : i32
    %0 = arith.cmpi eq, %arg1, %c0_i32 : i32
    %1 = arith.extui %0 : i1 to i32
    %c0_i32_0 = arith.constant 0 : i32
    %2 = arith.cmpi ne, %1, %c0_i32_0 : i32
    scf.if %2 {
      %c0_10 = arith.constant 0 : index
      %c0_11 = arith.constant 0 : index
      %12 = vector.load %arg4[%c0_10, %c0_11] : memref<128x1xf32, #tpu.memory_space<vmem>>, vector<128x1xf32>
      %13 = vector.shape_cast %12 : vector<128x1xf32> to vector<128x1xf32>
      %14 = vector.broadcast %13 : vector<128x1xf32> to vector<128x128xf32>
      %c0_12 = arith.constant 0 : index
      %c0_13 = arith.constant 0 : index
      %15 = vector.load %arg8[%c0_12, %c0_13] : memref<128x128xf32, #tpu.memory_space<vmem>>, vector<128x128xf32>
      tpu.vector_store %arg8[%c0_12, %c0_13], %14 {strides = array<i32>} : memref<128x128xf32, #tpu.memory_space<vmem>>, vector<128x128xf32>,
    } else {
    }
    %c0 = arith.constant 0 : index
    %c0_1 = arith.constant 0 : index
    %3 = vector.load %arg8[%c0, %c0_1] : memref<128x128xf32, #tpu.memory_space<vmem>>, vector<128x128xf32>
    %c0_2 = arith.constant 0 : index
    %c0_3 = arith.constant 0 : index
    %4 = vector.load %arg3[%c0_2, %c0_3] : memref<128x128xf32, #tpu.memory_space<vmem>>, vector<128x128xf32>
    %c0_4 = arith.constant 0 : index
    %c0_5 = arith.constant 0 : index
    %5 = vector.load %arg2[%c0_4, %c0_5] : memref<128x128xf32, #tpu.memory_space<vmem>>, vector<128x128xf32>
    %cst = arith.constant dense<0.000000e+00> : vector<128x128xf32>
    %6 = tpu.matmul %4, %5, %cst {dimension_numbers = #tpu.dot_dimension_numbers<[1], [1], [0], [0], [0, 0, 1, 0], [], []>} : vector<128x128xf32>, vector<128x128xf32>, vector<128x128xf32> -> vector<128x128xf32>
    %7 = arith.addf %3, %6 : vector<128x128xf32>
    %c0_6 = arith.constant 0 : index
    %c0_7 = arith.constant 0 : index
    %8 = vector.load %arg8[%c0_6, %c0_7] : memref<128x128xf32, #tpu.memory_space<vmem>>, vector<128x128xf32>
    tpu.vector_store %arg8[%c0_6, %c0_7], %7 {strides = array<i32>} : memref<128x128xf32, #tpu.memory_space<vmem>>, vector<128x128xf32>,
    %c0_i32_8 = arith.constant 0 : i32
    %9 = arith.cmpi eq, %arg1, %c0_i32_8 : i32
    %10 = arith.extui %9 : i1 to i32
    %c0_i32_9 = arith.constant 0 : i32
    %11 = arith.cmpi ne, %10, %c0_i32_9 : i32
    scf.if %11 {
      %c0_10 = arith.constant 0 : index
      %c0_11 = arith.constant 0 : index
      %12 = vector.load %arg8[%c0_10, %c0_11] : memref<128x128xf32, #tpu.memory_space<vmem>>, vector<128x128xf32>
      %cst_12 = arith.constant 0.000000e+00 : f32
      %13 = vector.broadcast %cst_12 : f32 to vector<128x128xf32>
      %14 = arith.maximumf %12, %13 : vector<128x128xf32>
      %c0_13 = arith.constant 0 : index
      %c0_14 = arith.constant 0 : index
      %15 = vector.load %arg5[%c0_13, %c0_14] : memref<128x1xf32, #tpu.memory_space<vmem>>, vector<128x1xf32>
      %16 = vector.broadcast %15 : vector<128x1xf32> to vector<128x128xf32>
      %17 = arith.mulf %14, %16 : vector<128x128xf32>
      %cst_15 = arith.constant dense<0.000000e+00> : vector<128xf32>
      %18 = vector.multi_reduction <add>, %17, %cst_15 [0] : vector<128x128xf32> to vector<128xf32>
      %19 = vector.shape_cast %18 : vector<128xf32> to vector<1x128xf32>
      %c0_16 = arith.constant 0 : index
      %20 = memref.load %arg6[%c0_16] : memref<1xf32, #tpu.memory_space<smem>>
      %21 = vector.broadcast %20 : f32 to vector<1x128xf32>
      %22 = arith.addf %19, %21 : vector<1x128xf32>
      %c0_17 = arith.constant 0 : index
      %c0_18 = arith.constant 0 : index
      %23 = vector.load %arg7[%c0_17, %c0_18] : memref<1x128xf32, #tpu.memory_space<vmem>>, vector<1x128xf32>
      tpu.vector_store %arg7[%c0_17, %c0_18], %22 {strides = array<i32>} : memref<1x128xf32, #tpu.memory_space<vmem>>, vector<1x128xf32>,
    } else {
    }
    return
  }
  func.func @transform_0(%arg0: i32, %arg1: i32) -> (i32, i32) {
    %c0_i32 = arith.constant 0 : i32
    return %arg0, %arg1 : i32, i32
  }
  func.func @transform_1(%arg0: i32, %arg1: i32) -> (i32, i32) {
    %c0_i32 = arith.constant 0 : i32
    %c0_i32_0 = arith.constant 0 : i32
    return %c0_i32, %arg1 : i32, i32
  }
  func.func @transform_2(%arg0: i32, %arg1: i32) -> (i32, i32) {
    %c0_i32 = arith.constant 0 : i32
    %c0_i32_0 = arith.constant 0 : i32
    %c0_i32_1 = arith.constant 0 : i32
    return %c0_i32, %c0_i32_0 : i32, i32
  }
  func.func @transform_3(%arg0: i32, %arg1: i32) -> (i32, i32) {
    %c0_i32 = arith.constant 0 : i32
    %c0_i32_0 = arith.constant 0 : i32
    %c0_i32_1 = arith.constant 0 : i32
    return %c0_i32, %c0_i32_0 : i32, i32
  }
  func.func @transform_4(%arg0: i32, %arg1: i32) -> i32 {
    %c0_i32 = arith.constant 0 : i32
    %c0_i32_0 = arith.constant 0 : i32
    return %c0_i32 : i32
  }
  func.func @transform_5(%arg0: i32, %arg1: i32) -> (i32, i32) {
    %c0_i32 = arith.constant 0 : i32
    %c0_i32_0 = arith.constant 0 : i32
    return %c0_i32, %arg0 : i32, i32
  }
}

</mosaic_0001>

<llo_original>
// kernel: tpu_custom_call.1
$region0: #{tpu_custom_call.1}
  #allocation0 [shape = 'u32[]', space=smem, size = 0x4, offset = 0x4, fixed_abs, tag = 'smem constant byte address 0x4 - core index']
  #allocation1 [shape = 'u32[72,128]{1,0:T(1,128)}', space=vmem, size = 0x9000, scoped, tag = 'internal scratch']
  #allocation2 [shape = 'f32[128,128]{1,0:T(8,128)}', space=vmem, size = 0x10000, scoped, tag = 'scratch operand']
  #allocation3 [shape = 'f32[1]{0:T(128)S(6)}', space=smem, size = 0x200, scoped, tag = 'scoped memory for tpu_custom_call.1']
  %s0 = inlined_call_operand.vmem [shape: f32[128,128], index: 0, kind: input, shape index: {}]
  %s1 = inlined_call_operand.vmem [shape: f32[128,128], index: 1, kind: input, shape index: {}]
  %s2 = inlined_call_operand.vmem [shape: f32[128,1], index: 2, kind: input, shape index: {}]
  %s3 = inlined_call_operand.vmem [shape: f32[128,1], index: 3, kind: input, shape index: {}]
  %s4 = inlined_call_operand.<no memory space> [shape: f32[1], index: 4, kind: input, shape index: {}]
  %s5 = inlined_call_operand.hbm [shape: f32[1,128], index: 5, kind: output, shape index: {}]
  %s6 = sld [smem:[#allocation0]]
  $region38: #{tpu_custom_call.1} parent=0
    _
  %s8 = ssub.s32 1, %s6
  %s9 = scalar_select 0, %s8, %s6
  %10 = sst [smem:[#allocation3]] %s4
  $region1: #{tpu_custom_call.1} parent=0
    #allocation4 [shape = 'u8[512]{0}', space=vmem, size = 0x400, scoped, tag = 'output window, operand 0, single buffered']
    #allocation5 [shape = 's32[1]{0}', space=sflag, size = 0x4, scoped, tag = 'scoped memory for tpu_custom_call.1']
    %11 = vsyncpa [#allocation5], 0
    // Predicated region
    $region2: #{tpu_custom_call.1} parent=1 // pred_check
      _
    $region3: #{tpu_custom_call.1} parent=1 // pred_check_branch
      %13 = sbr.rel (0) target = $region5
    $region4: #{tpu_custom_call.1} parent=1 // pred_region
      _
    $region5: #{tpu_custom_call.1} parent=1 // pred_fallthru
      _
    // Predicated region
    $region6: #{tpu_custom_call.1} parent=1 // pred_check
      _
    $region7: #{tpu_custom_call.1} parent=1 // pred_check_branch
      %15 = sbr.rel (0) target = $region9
    $region8: #{tpu_custom_call.1} parent=1 // pred_region
      _
    $region9: #{tpu_custom_call.1} parent=1 // pred_fallthru
      _
    // Predicated region
    $region10: #{tpu_custom_call.1} parent=1 // pred_check
      _
    $region11: #{tpu_custom_call.1} parent=1 // pred_check_branch
      %17 = sbr.rel (0) target = $region13
    $region12: #{tpu_custom_call.1} parent=1 // pred_region
      _
    $region13: #{tpu_custom_call.1} parent=1 // pred_fallthru
      _
    // Predicated region
    $region14: #{tpu_custom_call.1} parent=1 // pred_check
      _
    $region15: #{tpu_custom_call.1} parent=1 // pred_check_branch
      %19 = sbr.rel (0) target = $region17
    $region16: #{tpu_custom_call.1} parent=1 // pred_region
      _
    $region17: #{tpu_custom_call.1} parent=1 // pred_fallthru
      _
    // Predicated region
    $region18: #{tpu_custom_call.1} parent=1 // pred_check
      _
    $region19: #{tpu_custom_call.1} parent=1 // pred_check_branch
      %21 = sbr.rel (0) target = $region21
    $region20: #{tpu_custom_call.1} parent=1 // pred_region
      _
    $region21: #{tpu_custom_call.1} parent=1 // pred_fallthru
      _
    %p22 = scmp.eq.s32.totalorder 0, 0
    // Predicated region
    $region22: #{tpu_custom_call.1} parent=1 // pred_check
      %p23 = pneg %p22
    $region23: #{tpu_custom_call.1} parent=1 // pred_check_branch
      %25 = sbr.rel (%p23) target = $region25
    $region24: #{tpu_custom_call.1} parent=1 // pred_region
      %v26 = vld [vmem:[%s2] sm:$0xff]
      %v27 = vld [vmem:[%s2 + $0x8] sm:$0xff]
      %v28 = vld [vmem:[%s2 + $0x10] sm:$0xff]
      %v29 = vld [vmem:[%s2 + $0x18] sm:$0xff]
      %v30 = vld [vmem:[%s2 + $0x20] sm:$0xff]
      %v31 = vld [vmem:[%s2 + $0x28] sm:$0xff]
      %v32 = vld [vmem:[%s2 + $0x30] sm:$0xff]
      %v33 = vld [vmem:[%s2 + $0x38] sm:$0xff]
      %v34 = vld [vmem:[%s2 + $0x40] sm:$0xff]
      %v35 = vld [vmem:[%s2 + $0x48] sm:$0xff]
      %v36 = vld [vmem:[%s2 + $0x50] sm:$0xff]
      %v37 = vld [vmem:[%s2 + $0x58] sm:$0xff]
      %v38 = vld [vmem:[%s2 + $0x60] sm:$0xff]
      %v39 = vld [vmem:[%s2 + $0x68] sm:$0xff]
      %v40 = vld [vmem:[%s2 + $0x70] sm:$0xff]
      %v41 = vld [vmem:[%s2 + $0x78] sm:$0xff]
      %43 = vset.pattern.permute.xlu0 0
      %44 = vperm.xlu0 %43, %v26
      %v45 = vpop.permute.xlu0 %44
      %48 = vset.pattern.permute.xlu0 0
      %49 = vperm.xlu0 %48, %v27
      %v50 = vpop.permute.xlu0 %49
      %53 = vset.pattern.permute.xlu0 0
      %54 = vperm.xlu0 %53, %v28
      %v55 = vpop.permute.xlu0 %54
      %58 = vset.pattern.permute.xlu0 0
      %59 = vperm.xlu0 %58, %v29
      %v60 = vpop.permute.xlu0 %59
      %63 = vset.pattern.permute.xlu0 0
      %64 = vperm.xlu0 %63, %v30
      %v65 = vpop.permute.xlu0 %64
      %68 = vset.pattern.permute.xlu0 0
      %69 = vperm.xlu0 %68, %v31
      %v70 = vpop.permute.xlu0 %69
      %73 = vset.pattern.permute.xlu0 0
      %74 = vperm.xlu0 %73, %v32
      %v75 = vpop.permute.xlu0 %74
      %78 = vset.pattern.permute.xlu0 0
      %79 = vperm.xlu0 %78, %v33
      %v80 = vpop.permute.xlu0 %79
      %83 = vset.pattern.permute.xlu0 0
      %84 = vperm.xlu0 %83, %v34
      %v85 = vpop.permute.xlu0 %84
      %88 = vset.pattern.permute.xlu0 0
      %89 = vperm.xlu0 %88, %v35
      %v90 = vpop.permute.xlu0 %89
      %93 = vset.pattern.permute.xlu0 0
      %94 = vperm.xlu0 %93, %v36
      %v95 = vpop.permute.xlu0 %94
      %98 = vset.pattern.permute.xlu0 0
      %99 = vperm.xlu0 %98, %v37
      %v100 = vpop.permute.xlu0 %99
      %103 = vset.pattern.permute.xlu0 0
      %104 = vperm.xlu0 %103, %v38
      %v105 = vpop.permute.xlu0 %104
      %108 = vset.pattern.permute.xlu0 0
      %109 = vperm.xlu0 %108, %v39
      %v110 = vpop.permute.xlu0 %109
      %113 = vset.pattern.permute.xlu0 0
      %114 = vperm.xlu0 %113, %v40
      %v115 = vpop.permute.xlu0 %114
      %118 = vset.pattern.permute.xlu0 0
      %119 = vperm.xlu0 %118, %v41
      %v120 = vpop.permute.xlu0 %119
      %122 = vst [vmem:[#allocation2] sm:$0xff] %v45
      %123 = vst [vmem:[#allocation2 + $0x8] sm:$0xff] %v50
      %124 = vst [vmem:[#allocation2 + $0x10] sm:$0xff] %v55
      %125 = vst [vmem:[#allocation2 + $0x18] sm:$0xff] %v60
      %126 = vst [vmem:[#allocation2 + $0x20] sm:$0xff] %v65
      %127 = vst [vmem:[#allocation2 + $0x28] sm:$0xff] %v70
      %128 = vst [vmem:[#allocation2 + $0x30] sm:$0xff] %v75
      %129 = vst [vmem:[#allocation2 + $0x38] sm:$0xff] %v80
      %130 = vst [vmem:[#allocation2 + $0x40] sm:$0xff] %v85
      %131 = vst [vmem:[#allocation2 + $0x48] sm:$0xff] %v90
      %132 = vst [vmem:[#allocation2 + $0x50] sm:$0xff] %v95
      %133 = vst [vmem:[#allocation2 + $0x58] sm:$0xff] %v100
      %134 = vst [vmem:[#allocation2 + $0x60] sm:$0xff] %v105
      %135 = vst [vmem:[#allocation2 + $0x68] sm:$0xff] %v110
      %136 = vst [vmem:[#allocation2 + $0x70] sm:$0xff] %v115
      %137 = vst [vmem:[#allocation2 + $0x78] sm:$0xff] %v120
    $region25: #{tpu_custom_call.1} parent=1 // pred_fallthru
      _
    %v138 = vld [vmem:[#allocation2] sm:$0xff]
    %v139 = vld [vmem:[#allocation2 + $0x8] sm:$0xff]
    %v140 = vld [vmem:[#allocation2 + $0x10] sm:$0xff]
    %v141 = vld [vmem:[#allocation2 + $0x18] sm:$0xff]
    %v142 = vld [vmem:[#allocation2 + $0x20] sm:$0xff]
    %v143 = vld [vmem:[#allocation2 + $0x28] sm:$0xff]
    %v144 = vld [vmem:[#allocation2 + $0x30] sm:$0xff]
    %v145 = vld [vmem:[#allocation2 + $0x38] sm:$0xff]
    %v146 = vld [vmem:[#allocation2 + $0x40] sm:$0xff]
    %v147 = vld [vmem:[#allocation2 + $0x48] sm:$0xff]
    %v148 = vld [vmem:[#allocation2 + $0x50] sm:$0xff]
    %v149 = vld [vmem:[#allocation2 + $0x58] sm:$0xff]
    %v150 = vld [vmem:[#allocation2 + $0x60] sm:$0xff]
    %v151 = vld [vmem:[#allocation2 + $0x68] sm:$0xff]
    %v152 = vld [vmem:[#allocation2 + $0x70] sm:$0xff]
    %v153 = vld [vmem:[#allocation2 + $0x78] sm:$0xff]
    %v154 = vld [vmem:[%s1] sm:$0xff]
    %v155 = vld [vmem:[%s1 + $0x8] sm:$0xff]
    %v156 = vld [vmem:[%s1 + $0x10] sm:$0xff]
    %v157 = vld [vmem:[%s1 + $0x18] sm:$0xff]
    %v158 = vld [vmem:[%s1 + $0x20] sm:$0xff]
    %v159 = vld [vmem:[%s1 + $0x28] sm:$0xff]
    %v160 = vld [vmem:[%s1 + $0x30] sm:$0xff]
    %v161 = vld [vmem:[%s1 + $0x38] sm:$0xff]
    %v162 = vld [vmem:[%s1 + $0x40] sm:$0xff]
    %v163 = vld [vmem:[%s1 + $0x48] sm:$0xff]
    %v164 = vld [vmem:[%s1 + $0x50] sm:$0xff]
    %v165 = vld [vmem:[%s1 + $0x58] sm:$0xff]
    %v166 = vld [vmem:[%s1 + $0x60] sm:$0xff]
    %v167 = vld [vmem:[%s1 + $0x68] sm:$0xff]
    %v168 = vld [vmem:[%s1 + $0x70] sm:$0xff]
    %v169 = vld [vmem:[%s1 + $0x78] sm:$0xff]
    %v170 = vld [vmem:[%s0] sm:$0xff]
    %v171 = vld [vmem:[%s0 + $0x8] sm:$0xff]
    %v172 = vld [vmem:[%s0 + $0x10] sm:$0xff]
    %v173 = vld [vmem:[%s0 + $0x18] sm:$0xff]
    %v174 = vld [vmem:[%s0 + $0x20] sm:$0xff]
    %v175 = vld [vmem:[%s0 + $0x28] sm:$0xff]
    %v176 = vld [vmem:[%s0 + $0x30] sm:$0xff]
    %v177 = vld [vmem:[%s0 + $0x38] sm:$0xff]
    %v178 = vld [vmem:[%s0 + $0x40] sm:$0xff]
    %v179 = vld [vmem:[%s0 + $0x48] sm:$0xff]
    %v180 = vld [vmem:[%s0 + $0x50] sm:$0xff]
    %v181 = vld [vmem:[%s0 + $0x58] sm:$0xff]
    %v182 = vld [vmem:[%s0 + $0x60] sm:$0xff]
    %v183 = vld [vmem:[%s0 + $0x68] sm:$0xff]
    %v184 = vld [vmem:[%s0 + $0x70] sm:$0xff]
    %v185 = vld [vmem:[%s0 + $0x78] sm:$0xff]
    %186 = vmatpush.xpose.msra.mxu0 %v185
    %187 = vmatpush.xpose.msra.mxu0 %v184
    %188 = vmatpush.xpose.msra.mxu0 %v183
    %189 = vmatpush.xpose.msra.mxu0 %v182
    %190 = vmatpush.xpose.msra.mxu0 %v181
    %191 = vmatpush.xpose.msra.mxu0 %v180
    %192 = vmatpush.xpose.msra.mxu0 %v179
    %193 = vmatpush.xpose.msra.mxu0 %v178
    %194 = vmatpush.xpose.msra.mxu0 %v177
    %195 = vmatpush.xpose.msra.mxu0 %v176
    %196 = vmatpush.xpose.msra.mxu0 %v175
    %197 = vmatpush.xpose.msra.mxu0 %v174
    %198 = vmatpush.xpose.msra.mxu0 %v173
    %199 = vmatpush.xpose.msra.mxu0 %v172
    %200 = vmatpush.xpose.msra.mxu0 %v171
    %201 = vmatpush.xpose.msra.mxu0 %v170
    %202 = vmatmul.f32.gmra.mxu0 %v154
    %v203 = vpop.f32.mrf.mxu0
    %v204 = vadd.f32 0.0, %v203
    %205 = vmatmul.f32.gmra.mxu0 %v155
    %v206 = vpop.f32.mrf.mxu0
    %v207 = vadd.f32 0.0, %v206
    %208 = vmatmul.f32.gmra.mxu0 %v156
    %v209 = vpop.f32.mrf.mxu0
    %v210 = vadd.f32 0.0, %v209
    %211 = vmatmul.f32.gmra.mxu0 %v157
    %v212 = vpop.f32.mrf.mxu0
    %v213 = vadd.f32 0.0, %v212
    %214 = vmatmul.f32.gmra.mxu0 %v158
    %v215 = vpop.f32.mrf.mxu0
    %v216 = vadd.f32 0.0, %v215
    %217 = vmatmul.f32.gmra.mxu0 %v159
    %v218 = vpop.f32.mrf.mxu0
    %v219 = vadd.f32 0.0, %v218
    %220 = vmatmul.f32.gmra.mxu0 %v160
    %v221 = vpop.f32.mrf.mxu0
    %v222 = vadd.f32 0.0, %v221
    %223 = vmatmul.f32.gmra.mxu0 %v161
    %v224 = vpop.f32.mrf.mxu0
    %v225 = vadd.f32 0.0, %v224
    %226 = vmatmul.f32.gmra.mxu0 %v162
    %v227 = vpop.f32.mrf.mxu0
    %v228 = vadd.f32 0.0, %v227
    %229 = vmatmul.f32.gmra.mxu0 %v163
    %v230 = vpop.f32.mrf.mxu0
    %v231 = vadd.f32 0.0, %v230
    %232 = vmatmul.f32.gmra.mxu0 %v164
    %v233 = vpop.f32.mrf.mxu0
    %v234 = vadd.f32 0.0, %v233
    %235 = vmatmul.f32.gmra.mxu0 %v165
    %v236 = vpop.f32.mrf.mxu0
    %v237 = vadd.f32 0.0, %v236
    %238 = vmatmul.f32.gmra.mxu0 %v166
    %v239 = vpop.f32.mrf.mxu0
    %v240 = vadd.f32 0.0, %v239
    %241 = vmatmul.f32.gmra.mxu0 %v167
    %v242 = vpop.f32.mrf.mxu0
    %v243 = vadd.f32 0.0, %v242
    %244 = vmatmul.f32.gmra.mxu0 %v168
    %v245 = vpop.f32.mrf.mxu0
    %v246 = vadd.f32 0.0, %v245
    %247 = vmatmul.f32.gmra.mxu0 %v169
    %v248 = vpop.f32.mrf.mxu0
    %v249 = vadd.f32 0.0, %v248
    %250 = vdwg.mxu0
    %v251 = vadd.f32 %v138, %v204
    %v252 = vadd.f32 %v139, %v207
    %v253 = vadd.f32 %v140, %v210
    %v254 = vadd.f32 %v141, %v213
    %v255 = vadd.f32 %v142, %v216
    %v256 = vadd.f32 %v143, %v219
    %v257 = vadd.f32 %v144, %v222
    %v258 = vadd.f32 %v145, %v225
    %v259 = vadd.f32 %v146, %v228
    %v260 = vadd.f32 %v147, %v231
    %v261 = vadd.f32 %v148, %v234
    %v262 = vadd.f32 %v149, %v237
    %v263 = vadd.f32 %v150, %v240
    %v264 = vadd.f32 %v151, %v243
    %v265 = vadd.f32 %v152, %v246
    %v266 = vadd.f32 %v153, %v249
    %267 = vst [vmem:[#allocation2] sm:$0xff] %v251
    %268 = vst [vmem:[#allocation2 + $0x8] sm:$0xff] %v252
    %269 = vst [vmem:[#allocation2 + $0x10] sm:$0xff] %v253
    %270 = vst [vmem:[#allocation2 + $0x18] sm:$0xff] %v254
    %271 = vst [vmem:[#allocation2 + $0x20] sm:$0xff] %v255
    %272 = vst [vmem:[#allocation2 + $0x28] sm:$0xff] %v256
    %273 = vst [vmem:[#allocation2 + $0x30] sm:$0xff] %v257
    %274 = vst [vmem:[#allocation2 + $0x38] sm:$0xff] %v258
    %275 = vst [vmem:[#allocation2 + $0x40] sm:$0xff] %v259
    %276 = vst [vmem:[#allocation2 + $0x48] sm:$0xff] %v260
    %277 = vst [vmem:[#allocation2 + $0x50] sm:$0xff] %v261
    %278 = vst [vmem:[#allocation2 + $0x58] sm:$0xff] %v262
    %279 = vst [vmem:[#allocation2 + $0x60] sm:$0xff] %v263
    %280 = vst [vmem:[#allocation2 + $0x68] sm:$0xff] %v264
    %281 = vst [vmem:[#allocation2 + $0x70] sm:$0xff] %v265
    %282 = vst [vmem:[#allocation2 + $0x78] sm:$0xff] %v266
    // Predicated region
    $region26: #{tpu_custom_call.1} parent=1 // pred_check
      %p283 = pneg %p22
    $region27: #{tpu_custom_call.1} parent=1 // pred_check_branch
      %285 = sbr.rel (%p283) target = $region29
    $region28: #{tpu_custom_call.1} parent=1 // pred_region
      %v286 = vld [vmem:[#allocation2] sm:$0xff]
      %v287 = vld [vmem:[#allocation2 + $0x8] sm:$0xff]
      %v288 = vld [vmem:[#allocation2 + $0x10] sm:$0xff]
      %v289 = vld [vmem:[#allocation2 + $0x18] sm:$0xff]
      %v290 = vld [vmem:[#allocation2 + $0x20] sm:$0xff]
      %v291 = vld [vmem:[#allocation2 + $0x28] sm:$0xff]
      %v292 = vld [vmem:[#allocation2 + $0x30] sm:$0xff]
      %v293 = vld [vmem:[#allocation2 + $0x38] sm:$0xff]
      %v294 = vld [vmem:[#allocation2 + $0x40] sm:$0xff]
      %v295 = vld [vmem:[#allocation2 + $0x48] sm:$0xff]
      %v296 = vld [vmem:[#allocation2 + $0x50] sm:$0xff]
      %v297 = vld [vmem:[#allocation2 + $0x58] sm:$0xff]
      %v298 = vld [vmem:[#allocation2 + $0x60] sm:$0xff]
      %v299 = vld [vmem:[#allocation2 + $0x68] sm:$0xff]
      %v300 = vld [vmem:[#allocation2 + $0x70] sm:$0xff]
      %v301 = vld [vmem:[#allocation2 + $0x78] sm:$0xff]
      %v302 = vmax.f32 %v286, 0.0
      %v303 = vmax.f32 %v287, 0.0
      %v304 = vmax.f32 %v288, 0.0
      %v305 = vmax.f32 %v289, 0.0
      %v306 = vmax.f32 %v290, 0.0
      %v307 = vmax.f32 %v291, 0.0
      %v308 = vmax.f32 %v292, 0.0
      %v309 = vmax.f32 %v293, 0.0
      %v310 = vmax.f32 %v294, 0.0
      %v311 = vmax.f32 %v295, 0.0
      %v312 = vmax.f32 %v296, 0.0
      %v313 = vmax.f32 %v297, 0.0
      %v314 = vmax.f32 %v298, 0.0
      %v315 = vmax.f32 %v299, 0.0
      %v316 = vmax.f32 %v300, 0.0
      %v317 = vmax.f32 %v301, 0.0
      %v318 = vld [vmem:[%s3] sm:$0xff]
      %v319 = vld [vmem:[%s3 + $0x8] sm:$0xff]
      %v320 = vld [vmem:[%s3 + $0x10] sm:$0xff]
      %v321 = vld [vmem:[%s3 + $0x18] sm:$0xff]
      %v322 = vld [vmem:[%s3 + $0x20] sm:$0xff]
      %v323 = vld [vmem:[%s3 + $0x28] sm:$0xff]
      %v324 = vld [vmem:[%s3 + $0x30] sm:$0xff]
      %v325 = vld [vmem:[%s3 + $0x38] sm:$0xff]
      %v326 = vld [vmem:[%s3 + $0x40] sm:$0xff]
      %v327 = vld [vmem:[%s3 + $0x48] sm:$0xff]
      %v328 = vld [vmem:[%s3 + $0x50] sm:$0xff]
      %v329 = vld [vmem:[%s3 + $0x58] sm:$0xff]
      %v330 = vld [vmem:[%s3 + $0x60] sm:$0xff]
      %v331 = vld [vmem:[%s3 + $0x68] sm:$0xff]
      %v332 = vld [vmem:[%s3 + $0x70] sm:$0xff]
      %v333 = vld [vmem:[%s3 + $0x78] sm:$0xff]
      %335 = vset.pattern.permute.xlu0 0
      %336 = vperm.xlu0 %335, %v318
      %v337 = vpop.permute.xlu0 %336
      %340 = vset.pattern.permute.xlu0 0
      %341 = vperm.xlu0 %340, %v319
      %v342 = vpop.permute.xlu0 %341
      %345 = vset.pattern.permute.xlu0 0
      %346 = vperm.xlu0 %345, %v320
      %v347 = vpop.permute.xlu0 %346
      %350 = vset.pattern.permute.xlu0 0
      %351 = vperm.xlu0 %350, %v321
      %v352 = vpop.permute.xlu0 %351
      %355 = vset.pattern.permute.xlu0 0
      %356 = vperm.xlu0 %355, %v322
      %v357 = vpop.permute.xlu0 %356
      %360 = vset.pattern.permute.xlu0 0
      %361 = vperm.xlu0 %360, %v323
      %v362 = vpop.permute.xlu0 %361
      %365 = vset.pattern.permute.xlu0 0
      %366 = vperm.xlu0 %365, %v324
      %v367 = vpop.permute.xlu0 %366
      %370 = vset.pattern.permute.xlu0 0
      %371 = vperm.xlu0 %370, %v325
      %v372 = vpop.permute.xlu0 %371
      %375 = vset.pattern.permute.xlu0 0
      %376 = vperm.xlu0 %375, %v326
      %v377 = vpop.permute.xlu0 %376
      %380 = vset.pattern.permute.xlu0 0
      %381 = vperm.xlu0 %380, %v327
      %v382 = vpop.permute.xlu0 %381
      %385 = vset.pattern.permute.xlu0 0
      %386 = vperm.xlu0 %385, %v328
      %v387 = vpop.permute.xlu0 %386
      %390 = vset.pattern.permute.xlu0 0
      %391 = vperm.xlu0 %390, %v329
      %v392 = vpop.permute.xlu0 %391
      %395 = vset.pattern.permute.xlu0 0
      %396 = vperm.xlu0 %395, %v330
      %v397 = vpop.permute.xlu0 %396
      %400 = vset.pattern.permute.xlu0 0
      %401 = vperm.xlu0 %400, %v331
      %v402 = vpop.permute.xlu0 %401
      %405 = vset.pattern.permute.xlu0 0
      %406 = vperm.xlu0 %405, %v332
      %v407 = vpop.permute.xlu0 %406
      %410 = vset.pattern.permute.xlu0 0
      %411 = vperm.xlu0 %410, %v333
      %v412 = vpop.permute.xlu0 %411
      %v414 = vmul.f32 %v302, %v337
      %v415 = vmul.f32 %v303, %v342
      %v416 = vmul.f32 %v304, %v347
      %v417 = vmul.f32 %v305, %v352
      %v418 = vmul.f32 %v306, %v357
      %v419 = vmul.f32 %v307, %v362
      %v420 = vmul.f32 %v308, %v367
      %v421 = vmul.f32 %v309, %v372
      %v422 = vmul.f32 %v310, %v377
      %v423 = vmul.f32 %v311, %v382
      %v424 = vmul.f32 %v312, %v387
      %v425 = vmul.f32 %v313, %v392
      %v426 = vmul.f32 %v314, %v397
      %v427 = vmul.f32 %v315, %v402
      %v428 = vmul.f32 %v316, %v407
      %v429 = vmul.f32 %v317, %v412
      %v430 = vadd.f32 %v414, %v415
      %v431 = vadd.f32 %v430, %v416
      %v432 = vadd.f32 %v431, %v417
      %v433 = vadd.f32 %v432, %v418
      %v434 = vadd.f32 %v433, %v419
      %v435 = vadd.f32 %v434, %v420
      %v436 = vadd.f32 %v435, %v421
      %v437 = vadd.f32 %v436, %v422
      %v438 = vadd.f32 %v437, %v423
      %v439 = vadd.f32 %v438, %v424
      %v440 = vadd.f32 %v439, %v425
      %v441 = vadd.f32 %v440, %v426
      %v442 = vadd.f32 %v441, %v427
      %v443 = vadd.f32 %v442, %v428
      %v444 = vadd.f32 %v443, %v429
      %v445 = vrot.slane %v444, 4
      %v446 = vadd.f32 %v444, %v445
      %v447 = vrot.slane %v446, 2
      %v448 = vadd.f32 %v446, %v447
      %v449 = vrot.slane %v448, 1
      %v450 = vadd.f32 %v448, %v449
      %s451 = sld [smem:[#allocation3]]
      %v452 = vstv %s451
      %v453 = vadd.f32 %v450, %v452
      %454 = vst [vmem:[#allocation4] sm:$0x1] %v453
    $region29: #{tpu_custom_call.1} parent=1 // pred_fallthru
      _
    // Predicated region
    $region30: #{tpu_custom_call.1} parent=1 // pred_check
      _
    $region31: #{tpu_custom_call.1} parent=1 // pred_check_branch
      %456 = sbr.rel (0) target = $region33
    $region32: #{tpu_custom_call.1} parent=1 // pred_region
      %458 = vsyncadd [#allocation5], 0
      %s460 = sshll.u32 [#allocation4], 4
      %s461 = int_to_ptr.vmem [resolvable:$true] %s460
      %s462 = sshll.u32 %s5, 4
      %s463 = int_to_ptr.hbm [resolvable:$true] %s462
      %465 = dma.vmem_to_hbm [thread:$0]  %s461, 16, %s463, [#allocation5]
    $region33: #{tpu_custom_call.1} parent=1 // pred_fallthru
      _
    // Predicated region
    $region34: #{tpu_custom_call.1} parent=1 // pred_check
      _
    $region35: #{tpu_custom_call.1} parent=1 // pred_check_branch
      %467 = sbr.rel (0) target = $region37
    $region36: #{tpu_custom_call.1} parent=1 // pred_region
      %469 = dma.done [#allocation5], 16
    $region37: #{tpu_custom_call.1} parent=1 // pred_fallthru
      _
    %470 = vsyncpa [#allocation5], 1

// kernel: tpu_custom_call.1
$region0: #{tpu_custom_call.1}
  #allocation0 [shape = 'u32[]', space=smem, size = 0x4, offset = 0x4, fixed_abs, tag = 'smem constant byte address 0x4 - core index']
  #allocation1 [shape = 'u32[72,128]{1,0:T(1,128)}', space=vmem, size = 0x9000, scoped, tag = 'internal scratch']
  #allocation2 [shape = 'f32[128,128]{1,0:T(8,128)}', space=vmem, size = 0x10000, scoped, tag = 'scratch operand']
  #allocation3 [shape = 'f32[1]{0:T(128)S(6)}', space=smem, size = 0x200, scoped, tag = 'scoped memory for tpu_custom_call.1']
  %s0 = inlined_call_operand.vmem [shape: f32[128,128], index: 0, kind: input, shape index: {}]
  %s1 = inlined_call_operand.vmem [shape: f32[128,128], index: 1, kind: input, shape index: {}]
  %s2 = inlined_call_operand.vmem [shape: f32[128,1], index: 2, kind: input, shape index: {}]
  %s3 = inlined_call_operand.vmem [shape: f32[128,1], index: 3, kind: input, shape index: {}]
  %s4 = inlined_call_operand.<no memory space> [shape: f32[1], index: 4, kind: input, shape index: {}]
  %s5 = inlined_call_operand.hbm [shape: f32[1,128], index: 5, kind: output, shape index: {}]
  %s6 = sld [smem:[#allocation0]]
  $region38: #{tpu_custom_call.1} parent=0
    _
  %s8 = ssub.s32 1, %s6
  %s9 = scalar_select 0, %s8, %s6
  %10 = sst [smem:[#allocation3]] %s4
  $region1: #{tpu_custom_call.1} parent=0
    #allocation4 [shape = 'u8[512]{0}', space=vmem, size = 0x400, scoped, tag = 'output window, operand 0, single buffered']
    #allocation5 [shape = 's32[1]{0}', space=sflag, size = 0x4, scoped, tag = 'scoped memory for tpu_custom_call.1']
    %11 = vsyncpa [#allocation5], 0
    // Predicated region
    $region2: #{tpu_custom_call.1} parent=1 // pred_check
      _
    $region3: #{tpu_custom_call.1} parent=1 // pred_check_branch
      %13 = sbr.rel (0) target = $region5
    $region4: #{tpu_custom_call.1} parent=1 // pred_region
      _
    $region5: #{tpu_custom_call.1} parent=1 // pred_fallthru
      _
    // Predicated region
    $region6: #{tpu_custom_call.1} parent=1 // pred_check
      _
    $region7: #{tpu_custom_call.1} parent=1 // pred_check_branch
      %15 = sbr.rel (0) target = $region9
    $region8: #{tpu_custom_call.1} parent=1 // pred_region
      _
    $region9: #{tpu_custom_call.1} parent=1 // pred_fallthru
      _
    // Predicated region
    $region10: #{tpu_custom_call.1} parent=1 // pred_check
      _
    $region11: #{tpu_custom_call.1} parent=1 // pred_check_branch
      %17 = sbr.rel (0) target = $region13
    $region12: #{tpu_custom_call.1} parent=1 // pred_region
      _
    $region13: #{tpu_custom_call.1} parent=1 // pred_fallthru
      _
    // Predicated region
    $region14: #{tpu_custom_call.1} parent=1 // pred_check
      _
    $region15: #{tpu_custom_call.1} parent=1 // pred_check_branch
      %19 = sbr.rel (0) target = $region17
    $region16: #{tpu_custom_call.1} parent=1 // pred_region
      _
    $region17: #{tpu_custom_call.1} parent=1 // pred_fallthru
      _
    // Predicated region
    $region18: #{tpu_custom_call.1} parent=1 // pred_check
      _
    $region19: #{tpu_custom_call.1} parent=1 // pred_check_branch
      %21 = sbr.rel (0) target = $region21
    $region20: #{tpu_custom_call.1} parent=1 // pred_region
      _
    $region21: #{tpu_custom_call.1} parent=1 // pred_fallthru
      _
    %p22 = scmp.eq.s32.totalorder 0, 0
    // Predicated region
    $region22: #{tpu_custom_call.1} parent=1 // pred_check
      %p23 = pneg %p22
    $region23: #{tpu_custom_call.1} parent=1 // pred_check_branch
      %25 = sbr.rel (%p23) target = $region25
    $region24: #{tpu_custom_call.1} parent=1 // pred_region
      %v26 = vld [vmem:[%s2] sm:$0xff]
      %v27 = vld [vmem:[%s2 + $0x8] sm:$0xff]
      %v28 = vld [vmem:[%s2 + $0x10] sm:$0xff]
      %v29 = vld [vmem:[%s2 + $0x18] sm:$0xff]
      %v30 = vld [vmem:[%s2 + $0x20] sm:$0xff]
      %v31 = vld [vmem:[%s2 + $0x28] sm:$0xff]
      %v32 = vld [vmem:[%s2 + $0x30] sm:$0xff]
      %v33 = vld [vmem:[%s2 + $0x38] sm:$0xff]
      %v34 = vld [vmem:[%s2 + $0x40] sm:$0xff]
      %v35 = vld [vmem:[%s2 + $0x48] sm:$0xff]
      %v36 = vld [vmem:[%s2 + $0x50] sm:$0xff]
      %v37 = vld [vmem:[%s2 + $0x58] sm:$0xff]
      %v38 = vld [vmem:[%s2 + $0x60] sm:$0xff]
      %v39 = vld [vmem:[%s2 + $0x68] sm:$0xff]
      %v40 = vld [vmem:[%s2 + $0x70] sm:$0xff]
      %v41 = vld [vmem:[%s2 + $0x78] sm:$0xff]
      %43 = vset.pattern.permute.xlu0 0
      %44 = vperm.xlu0 %43, %v26
      %v45 = vpop.permute.xlu0 %44
      %48 = vset.pattern.permute.xlu0 0
      %49 = vperm.xlu0 %48, %v27
      %v50 = vpop.permute.xlu0 %49
      %53 = vset.pattern.permute.xlu0 0
      %54 = vperm.xlu0 %53, %v28
      %v55 = vpop.permute.xlu0 %54
      %58 = vset.pattern.permute.xlu0 0
      %59 = vperm.xlu0 %58, %v29
      %v60 = vpop.permute.xlu0 %59
      %63 = vset.pattern.permute.xlu0 0
      %64 = vperm.xlu0 %63, %v30
      %v65 = vpop.permute.xlu0 %64
      %68 = vset.pattern.permute.xlu0 0
      %69 = vperm.xlu0 %68, %v31
      %v70 = vpop.permute.xlu0 %69
      %73 = vset.pattern.permute.xlu0 0
      %74 = vperm.xlu0 %73, %v32
      %v75 = vpop.permute.xlu0 %74
      %78 = vset.pattern.permute.xlu0 0
      %79 = vperm.xlu0 %78, %v33
      %v80 = vpop.permute.xlu0 %79
      %83 = vset.pattern.permute.xlu0 0
      %84 = vperm.xlu0 %83, %v34
      %v85 = vpop.permute.xlu0 %84
      %88 = vset.pattern.permute.xlu0 0
      %89 = vperm.xlu0 %88, %v35
      %v90 = vpop.permute.xlu0 %89
      %93 = vset.pattern.permute.xlu0 0
      %94 = vperm.xlu0 %93, %v36
      %v95 = vpop.permute.xlu0 %94
      %98 = vset.pattern.permute.xlu0 0
      %99 = vperm.xlu0 %98, %v37
      %v100 = vpop.permute.xlu0 %99
      %103 = vset.pattern.permute.xlu0 0
      %104 = vperm.xlu0 %103, %v38
      %v105 = vpop.permute.xlu0 %104
      %108 = vset.pattern.permute.xlu0 0
      %109 = vperm.xlu0 %108, %v39
      %v110 = vpop.permute.xlu0 %109
      %113 = vset.pattern.permute.xlu0 0
      %114 = vperm.xlu0 %113, %v40
      %v115 = vpop.permute.xlu0 %114
      %118 = vset.pattern.permute.xlu0 0
      %119 = vperm.xlu0 %118, %v41
      %v120 = vpop.permute.xlu0 %119
      %122 = vst [vmem:[#allocation2] sm:$0xff] %v45
      %123 = vst [vmem:[#allocation2 + $0x8] sm:$0xff] %v50
      %124 = vst [vmem:[#allocation2 + $0x10] sm:$0xff] %v55
      %125 = vst [vmem:[#allocation2 + $0x18] sm:$0xff] %v60
      %126 = vst [vmem:[#allocation2 + $0x20] sm:$0xff] %v65
      %127 = vst [vmem:[#allocation2 + $0x28] sm:$0xff] %v70
      %128 = vst [vmem:[#allocation2 + $0x30] sm:$0xff] %v75
      %129 = vst [vmem:[#allocation2 + $0x38] sm:$0xff] %v80
      %130 = vst [vmem:[#allocation2 + $0x40] sm:$0xff] %v85
      %131 = vst [vmem:[#allocation2 + $0x48] sm:$0xff] %v90
      %132 = vst [vmem:[#allocation2 + $0x50] sm:$0xff] %v95
      %133 = vst [vmem:[#allocation2 + $0x58] sm:$0xff] %v100
      %134 = vst [vmem:[#allocation2 + $0x60] sm:$0xff] %v105
      %135 = vst [vmem:[#allocation2 + $0x68] sm:$0xff] %v110
      %136 = vst [vmem:[#allocation2 + $0x70] sm:$0xff] %v115
      %137 = vst [vmem:[#allocation2 + $0x78] sm:$0xff] %v120
    $region25: #{tpu_custom_call.1} parent=1 // pred_fallthru
      _
    %v138 = vld [vmem:[#allocation2] sm:$0xff]
    %v139 = vld [vmem:[#allocation2 + $0x8] sm:$0xff]
    %v140 = vld [vmem:[#allocation2 + $0x10] sm:$0xff]
    %v141 = vld [vmem:[#allocation2 + $0x18] sm:$0xff]
    %v142 = vld [vmem:[#allocation2 + $0x20] sm:$0xff]
    %v143 = vld [vmem:[#allocation2 + $0x28] sm:$0xff]
    %v144 = vld [vmem:[#allocation2 + $0x30] sm:$0xff]
    %v145 = vld [vmem:[#allocation2 + $0x38] sm:$0xff]
    %v146 = vld [vmem:[#allocation2 + $0x40] sm:$0xff]
    %v147 = vld [vmem:[#allocation2 + $0x48] sm:$0xff]
    %v148 = vld [vmem:[#allocation2 + $0x50] sm:$0xff]
    %v149 = vld [vmem:[#allocation2 + $0x58] sm:$0xff]
    %v150 = vld [vmem:[#allocation2 + $0x60] sm:$0xff]
    %v151 = vld [vmem:[#allocation2 + $0x68] sm:$0xff]
    %v152 = vld [vmem:[#allocation2 + $0x70] sm:$0xff]
    %v153 = vld [vmem:[#allocation2 + $0x78] sm:$0xff]
    %v154 = vld [vmem:[%s1] sm:$0xff]
    %v155 = vld [vmem:[%s1 + $0x8] sm:$0xff]
    %v156 = vld [vmem:[%s1 + $0x10] sm:$0xff]
    %v157 = vld [vmem:[%s1 + $0x18] sm:$0xff]
    %v158 = vld [vmem:[%s1 + $0x20] sm:$0xff]
    %v159 = vld [vmem:[%s1 + $0x28] sm:$0xff]
    %v160 = vld [vmem:[%s1 + $0x30] sm:$0xff]
    %v161 = vld [vmem:[%s1 + $0x38] sm:$0xff]
    %v162 = vld [vmem:[%s1 + $0x40] sm:$0xff]
    %v163 = vld [vmem:[%s1 + $0x48] sm:$0xff]
    %v164 = vld [vmem:[%s1 + $0x50] sm:$0xff]
    %v165 = vld [vmem:[%s1 + $0x58] sm:$0xff]
    %v166 = vld [vmem:[%s1 + $0x60] sm:$0xff]
    %v167 = vld [vmem:[%s1 + $0x68] sm:$0xff]
    %v168 = vld [vmem:[%s1 + $0x70] sm:$0xff]
    %v169 = vld [vmem:[%s1 + $0x78] sm:$0xff]
    %v170 = vld [vmem:[%s0] sm:$0xff]
    %v171 = vld [vmem:[%s0 + $0x8] sm:$0xff]
    %v172 = vld [vmem:[%s0 + $0x10] sm:$0xff]
    %v173 = vld [vmem:[%s0 + $0x18] sm:$0xff]
    %v174 = vld [vmem:[%s0 + $0x20] sm:$0xff]
    %v175 = vld [vmem:[%s0 + $0x28] sm:$0xff]
    %v176 = vld [vmem:[%s0 + $0x30] sm:$0xff]
    %v177 = vld [vmem:[%s0 + $0x38] sm:$0xff]
    %v178 = vld [vmem:[%s0 + $0x40] sm:$0xff]
    %v179 = vld [vmem:[%s0 + $0x48] sm:$0xff]
    %v180 = vld [vmem:[%s0 + $0x50] sm:$0xff]
    %v181 = vld [vmem:[%s0 + $0x58] sm:$0xff]
    %v182 = vld [vmem:[%s0 + $0x60] sm:$0xff]
    %v183 = vld [vmem:[%s0 + $0x68] sm:$0xff]
    %v184 = vld [vmem:[%s0 + $0x70] sm:$0xff]
    %v185 = vld [vmem:[%s0 + $0x78] sm:$0xff]
    %186 = vmatpush.xpose.msra.mxu0 %v185
    %187 = vmatpush.xpose.msra.mxu0 %v184
    %188 = vmatpush.xpose.msra.mxu0 %v183
    %189 = vmatpush.xpose.msra.mxu0 %v182
    %190 = vmatpush.xpose.msra.mxu0 %v181
    %191 = vmatpush.xpose.msra.mxu0 %v180
    %192 = vmatpush.xpose.msra.mxu0 %v179
    %193 = vmatpush.xpose.msra.mxu0 %v178
    %194 = vmatpush.xpose.msra.mxu0 %v177
    %195 = vmatpush.xpose.msra.mxu0 %v176
    %196 = vmatpush.xpose.msra.mxu0 %v175
    %197 = vmatpush.xpose.msra.mxu0 %v174
    %198 = vmatpush.xpose.msra.mxu0 %v173
    %199 = vmatpush.xpose.msra.mxu0 %v172
    %200 = vmatpush.xpose.msra.mxu0 %v171
    %201 = vmatpush.xpose.msra.mxu0 %v170
    %202 = vmatmul.f32.gmra.mxu0 %v154
    %v203 = vpop.f32.mrf.mxu0
    %v204 = vadd.f32 0.0, %v203
    %205 = vmatmul.f32.gmra.mxu0 %v155
    %v206 = vpop.f32.mrf.mxu0
    %v207 = vadd.f32 0.0, %v206
    %208 = vmatmul.f32.gmra.mxu0 %v156
    %v209 = vpop.f32.mrf.mxu0
    %v210 = vadd.f32 0.0, %v209
    %211 = vmatmul.f32.gmra.mxu0 %v157
    %v212 = vpop.f32.mrf.mxu0
    %v213 = vadd.f32 0.0, %v212
    %214 = vmatmul.f32.gmra.mxu0 %v158
    %v215 = vpop.f32.mrf.mxu0
    %v216 = vadd.f32 0.0, %v215
    %217 = vmatmul.f32.gmra.mxu0 %v159
    %v218 = vpop.f32.mrf.mxu0
    %v219 = vadd.f32 0.0, %v218
    %220 = vmatmul.f32.gmra.mxu0 %v160
    %v221 = vpop.f32.mrf.mxu0
    %v222 = vadd.f32 0.0, %v221
    %223 = vmatmul.f32.gmra.mxu0 %v161
    %v224 = vpop.f32.mrf.mxu0
    %v225 = vadd.f32 0.0, %v224
    %226 = vmatmul.f32.gmra.mxu0 %v162
    %v227 = vpop.f32.mrf.mxu0
    %v228 = vadd.f32 0.0, %v227
    %229 = vmatmul.f32.gmra.mxu0 %v163
    %v230 = vpop.f32.mrf.mxu0
    %v231 = vadd.f32 0.0, %v230
    %232 = vmatmul.f32.gmra.mxu0 %v164
    %v233 = vpop.f32.mrf.mxu0
    %v234 = vadd.f32 0.0, %v233
    %235 = vmatmul.f32.gmra.mxu0 %v165
    %v236 = vpop.f32.mrf.mxu0
    %v237 = vadd.f32 0.0, %v236
    %238 = vmatmul.f32.gmra.mxu0 %v166
    %v239 = vpop.f32.mrf.mxu0
    %v240 = vadd.f32 0.0, %v239
    %241 = vmatmul.f32.gmra.mxu0 %v167
    %v242 = vpop.f32.mrf.mxu0
    %v243 = vadd.f32 0.0, %v242
    %244 = vmatmul.f32.gmra.mxu0 %v168
    %v245 = vpop.f32.mrf.mxu0
    %v246 = vadd.f32 0.0, %v245
    %247 = vmatmul.f32.gmra.mxu0 %v169
    %v248 = vpop.f32.mrf.mxu0
    %v249 = vadd.f32 0.0, %v248
    %250 = vdwg.mxu0
    %v251 = vadd.f32 %v138, %v204
    %v252 = vadd.f32 %v139, %v207
    %v253 = vadd.f32 %v140, %v210
    %v254 = vadd.f32 %v141, %v213
    %v255 = vadd.f32 %v142, %v216
    %v256 = vadd.f32 %v143, %v219
    %v257 = vadd.f32 %v144, %v222
    %v258 = vadd.f32 %v145, %v225
    %v259 = vadd.f32 %v146, %v228
    %v260 = vadd.f32 %v147, %v231
    %v261 = vadd.f32 %v148, %v234
    %v262 = vadd.f32 %v149, %v237
    %v263 = vadd.f32 %v150, %v240
    %v264 = vadd.f32 %v151, %v243
    %v265 = vadd.f32 %v152, %v246
    %v266 = vadd.f32 %v153, %v249
    %267 = vst [vmem:[#allocation2] sm:$0xff] %v251
    %268 = vst [vmem:[#allocation2 + $0x8] sm:$0xff] %v252
    %269 = vst [vmem:[#allocation2 + $0x10] sm:$0xff] %v253
    %270 = vst [vmem:[#allocation2 + $0x18] sm:$0xff] %v254
    %271 = vst [vmem:[#allocation2 + $0x20] sm:$0xff] %v255
    %272 = vst [vmem:[#allocation2 + $0x28] sm:$0xff] %v256
    %273 = vst [vmem:[#allocation2 + $0x30] sm:$0xff] %v257
    %274 = vst [vmem:[#allocation2 + $0x38] sm:$0xff] %v258
    %275 = vst [vmem:[#allocation2 + $0x40] sm:$0xff] %v259
    %276 = vst [vmem:[#allocation2 + $0x48] sm:$0xff] %v260
    %277 = vst [vmem:[#allocation2 + $0x50] sm:$0xff] %v261
    %278 = vst [vmem:[#allocation2 + $0x58] sm:$0xff] %v262
    %279 = vst [vmem:[#allocation2 + $0x60] sm:$0xff] %v263
    %280 = vst [vmem:[#allocation2 + $0x68] sm:$0xff] %v264
    %281 = vst [vmem:[#allocation2 + $0x70] sm:$0xff] %v265
    %282 = vst [vmem:[#allocation2 + $0x78] sm:$0xff] %v266
    // Predicated region
    $region26: #{tpu_custom_call.1} parent=1 // pred_check
      %p283 = pneg %p22
    $region27: #{tpu_custom_call.1} parent=1 // pred_check_branch
      %285 = sbr.rel (%p283) target = $region29
    $region28: #{tpu_custom_call.1} parent=1 // pred_region
      %v286 = vld [vmem:[#allocation2] sm:$0xff]
      %v287 = vld [vmem:[#allocation2 + $0x8] sm:$0xff]
      %v288 = vld [vmem:[#allocation2 + $0x10] sm:$0xff]
      %v289 = vld [vmem:[#allocation2 + $0x18] sm:$0xff]
      %v290 = vld [vmem:[#allocation2 + $0x20] sm:$0xff]
      %v291 = vld [vmem:[#allocation2 + $0x28] sm:$0xff]
      %v292 = vld [vmem:[#allocation2 + $0x30] sm:$0xff]
      %v293 = vld [vmem:[#allocation2 + $0x38] sm:$0xff]
      %v294 = vld [vmem:[#allocation2 + $0x40] sm:$0xff]
      %v295 = vld [vmem:[#allocation2 + $0x48] sm:$0xff]
      %v296 = vld [vmem:[#allocation2 + $0x50] sm:$0xff]
      %v297 = vld [vmem:[#allocation2 + $0x58] sm:$0xff]
      %v298 = vld [vmem:[#allocation2 + $0x60] sm:$0xff]
      %v299 = vld [vmem:[#allocation2 + $0x68] sm:$0xff]
      %v300 = vld [vmem:[#allocation2 + $0x70] sm:$0xff]
      %v301 = vld [vmem:[#allocation2 + $0x78] sm:$0xff]
      %v302 = vmax.f32 %v286, 0.0
      %v303 = vmax.f32 %v287, 0.0
      %v304 = vmax.f32 %v288, 0.0
      %v305 = vmax.f32 %v289, 0.0
      %v306 = vmax.f32 %v290, 0.0
      %v307 = vmax.f32 %v291, 0.0
      %v308 = vmax.f32 %v292, 0.0
      %v309 = vmax.f32 %v293, 0.0
      %v310 = vmax.f32 %v294, 0.0
      %v311 = vmax.f32 %v295, 0.0
      %v312 = vmax.f32 %v296, 0.0
      %v313 = vmax.f32 %v297, 0.0
      %v314 = vmax.f32 %v298, 0.0
      %v315 = vmax.f32 %v299, 0.0
      %v316 = vmax.f32 %v300, 0.0
      %v317 = vmax.f32 %v301, 0.0
      %v318 = vld [vmem:[%s3] sm:$0xff]
      %v319 = vld [vmem:[%s3 + $0x8] sm:$0xff]
      %v320 = vld [vmem:[%s3 + $0x10] sm:$0xff]
      %v321 = vld [vmem:[%s3 + $0x18] sm:$0xff]
      %v322 = vld [vmem:[%s3 + $0x20] sm:$0xff]
      %v323 = vld [vmem:[%s3 + $0x28] sm:$0xff]
      %v324 = vld [vmem:[%s3 + $0x30] sm:$0xff]
      %v325 = vld [vmem:[%s3 + $0x38] sm:$0xff]
      %v326 = vld [vmem:[%s3 + $0x40] sm:$0xff]
      %v327 = vld [vmem:[%s3 + $0x48] sm:$0xff]
      %v328 = vld [vmem:[%s3 + $0x50] sm:$0xff]
      %v329 = vld [vmem:[%s3 + $0x58] sm:$0xff]
      %v330 = vld [vmem:[%s3 + $0x60] sm:$0xff]
      %v331 = vld [vmem:[%s3 + $0x68] sm:$0xff]
      %v332 = vld [vmem:[%s3 + $0x70] sm:$0xff]
      %v333 = vld [vmem:[%s3 + $0x78] sm:$0xff]
      %335 = vset.pattern.permute.xlu0 0
      %336 = vperm.xlu0 %335, %v318
      %v337 = vpop.permute.xlu0 %336
      %340 = vset.pattern.permute.xlu0 0
      %341 = vperm.xlu0 %340, %v319
      %v342 = vpop.permute.xlu0 %341
      %345 = vset.pattern.permute.xlu0 0
      %346 = vperm.xlu0 %345, %v320
      %v347 = vpop.permute.xlu0 %346
      %350 = vset.pattern.permute.xlu0 0
      %351 = vperm.xlu0 %350, %v321
      %v352 = vpop.permute.xlu0 %351
      %355 = vset.pattern.permute.xlu0 0
      %356 = vperm.xlu0 %355, %v322
      %v357 = vpop.permute.xlu0 %356
      %360 = vset.pattern.permute.xlu0 0
      %361 = vperm.xlu0 %360, %v323
      %v362 = vpop.permute.xlu0 %361
      %365 = vset.pattern.permute.xlu0 0
      %366 = vperm.xlu0 %365, %v324
      %v367 = vpop.permute.xlu0 %366
      %370 = vset.pattern.permute.xlu0 0
      %371 = vperm.xlu0 %370, %v325
      %v372 = vpop.permute.xlu0 %371
      %375 = vset.pattern.permute.xlu0 0
      %376 = vperm.xlu0 %375, %v326
      %v377 = vpop.permute.xlu0 %376
      %380 = vset.pattern.permute.xlu0 0
      %381 = vperm.xlu0 %380, %v327
      %v382 = vpop.permute.xlu0 %381
      %385 = vset.pattern.permute.xlu0 0
      %386 = vperm.xlu0 %385, %v328
      %v387 = vpop.permute.xlu0 %386
      %390 = vset.pattern.permute.xlu0 0
      %391 = vperm.xlu0 %390, %v329
      %v392 = vpop.permute.xlu0 %391
      %395 = vset.pattern.permute.xlu0 0
      %396 = vperm.xlu0 %395, %v330
      %v397 = vpop.permute.xlu0 %396
      %400 = vset.pattern.permute.xlu0 0
      %401 = vperm.xlu0 %400, %v331
      %v402 = vpop.permute.xlu0 %401
      %405 = vset.pattern.permute.xlu0 0
      %406 = vperm.xlu0 %405, %v332
      %v407 = vpop.permute.xlu0 %406
      %410 = vset.pattern.permute.xlu0 0
      %411 = vperm.xlu0 %410, %v333
      %v412 = vpop.permute.xlu0 %411
      %v414 = vmul.f32 %v302, %v337
      %v415 = vmul.f32 %v303, %v342
      %v416 = vmul.f32 %v304, %v347
      %v417 = vmul.f32 %v305, %v352
      %v418 = vmul.f32 %v306, %v357
      %v419 = vmul.f32 %v307, %v362
      %v420 = vmul.f32 %v308, %v367
      %v421 = vmul.f32 %v309, %v372
      %v422 = vmul.f32 %v310, %v377
      %v423 = vmul.f32 %v311, %v382
      %v424 = vmul.f32 %v312, %v387
      %v425 = vmul.f32 %v313, %v392
      %v426 = vmul.f32 %v314, %v397
      %v427 = vmul.f32 %v315, %v402
      %v428 = vmul.f32 %v316, %v407
      %v429 = vmul.f32 %v317, %v412
      %v430 = vadd.f32 %v414, %v415
      %v431 = vadd.f32 %v430, %v416
      %v432 = vadd.f32 %v431, %v417
      %v433 = vadd.f32 %v432, %v418
      %v434 = vadd.f32 %v433, %v419
      %v435 = vadd.f32 %v434, %v420
      %v436 = vadd.f32 %v435, %v421
      %v437 = vadd.f32 %v436, %v422
      %v438 = vadd.f32 %v437, %v423
      %v439 = vadd.f32 %v438, %v424
      %v440 = vadd.f32 %v439, %v425
      %v441 = vadd.f32 %v440, %v426
      %v442 = vadd.f32 %v441, %v427
      %v443 = vadd.f32 %v442, %v428
      %v444 = vadd.f32 %v443, %v429
      %v445 = vrot.slane %v444, 4
      %v446 = vadd.f32 %v444, %v445
      %v447 = vrot.slane %v446, 2
      %v448 = vadd.f32 %v446, %v447
      %v449 = vrot.slane %v448, 1
      %v450 = vadd.f32 %v448, %v449
      %s451 = sld [smem:[#allocation3]]
      %v452 = vstv %s451
      %v453 = vadd.f32 %v450, %v452
      %454 = vst [vmem:[#allocation4] sm:$0x1] %v453
    $region29: #{tpu_custom_call.1} parent=1 // pred_fallthru
      _
    // Predicated region
    $region30: #{tpu_custom_call.1} parent=1 // pred_check
      _
    $region31: #{tpu_custom_call.1} parent=1 // pred_check_branch
      %456 = sbr.rel (0) target = $region33
    $region32: #{tpu_custom_call.1} parent=1 // pred_region
      %458 = vsyncadd [#allocation5], 0
      %s460 = sshll.u32 [#allocation4], 4
      %s461 = int_to_ptr.vmem [resolvable:$true] %s460
      %s462 = sshll.u32 %s5, 4
      %s463 = int_to_ptr.hbm [resolvable:$true] %s462
      %465 = dma.vmem_to_hbm [thread:$0]  %s461, 16, %s463, [#allocation5]
    $region33: #{tpu_custom_call.1} parent=1 // pred_fallthru
      _
    // Predicated region
    $region34: #{tpu_custom_call.1} parent=1 // pred_check
      _
    $region35: #{tpu_custom_call.1} parent=1 // pred_check_branch
      %467 = sbr.rel (0) target = $region37
    $region36: #{tpu_custom_call.1} parent=1 // pred_region
      %469 = dma.done [#allocation5], 16
    $region37: #{tpu_custom_call.1} parent=1 // pred_fallthru
      _
    %470 = vsyncpa [#allocation5], 1

</llo_original>
